<compile_context>
chip_gen: v7x
topology: tpu7x:2x2x1
jax: 0.10.0
libtpu: 0.0.40
codegen_flags: <defaults>
</compile_context>

<pallas_src>
import functools

import jax
import jax.numpy as jnp
from jax.experimental import pallas as pl
from jax.experimental.pallas import tpu as pltpu

MARGIN = 2.0
PAIRWISE_EPS = 1e-6            # matches F.pairwise_distance default eps


def _chip_defaults():
    """(target input-block bytes, vmem_limit_bytes) per TPU generation."""
    try:
        kind = jax.devices()[0].device_kind.lower()
    except Exception:  # pragma: no cover - defensive
        kind = ""
    if any(tag in kind for tag in ("v2", "v3", "v4", "v5", "v6")):
        # 128 MiB physical VMEM: larger blocks amortize per-step overhead.
        return 8 * 1024 * 1024, 64 * 1024 * 1024
    # v7x / unknown: only 64 MiB physical VMEM -> stay conservative so the
    # double-buffered inputs + f32 intermediates never spill.
    return 4 * 1024 * 1024, 48 * 1024 * 1024


def _contrastive_loss_kernel(x1_ref, x2_ref, y_ref, out_ref, *,
                             margin, batch, block_cols, ragged):
    i = pl.program_id(0)   # batch-tile index ("parallel" axis)

    # Cast on load; all math in f32 (v5e has no bf16 VALU, and f32 keeps the
    # accumulation faithful to the PyTorch reference).
    x1 = x1_ref[...].astype(jnp.float32)          # (D, TB)
    x2 = x2_ref[...].astype(jnp.float32)          # (D, TB)

    diff = x1 - x2 + PAIRWISE_EPS                 # eps on the diff (PyTorch)
    # Reduce over the feature axis (sublanes) -> lane-dense (1, TB) row.
    sq_dist = jnp.sum(diff * diff, axis=0, keepdims=True)     # (1, TB)
    dist = jnp.sqrt(sq_dist)                                   # EUP sqrt

    y = y_ref[...].astype(jnp.float32)                         # (1, TB)
    hinge = jnp.maximum(margin - dist, 0.0)
    loss = (1.0 - y) * sq_dist + y * (hinge * hinge)           # (1, TB)

    if ragged:  # static: only emitted when B does not divide into full tiles
        col = i * block_cols + jax.lax.broadcasted_iota(
            jnp.int32, loss.shape, 1)
        loss = jnp.where(col < batch, loss, 0.0)

    out_ref[...] = jnp.sum(loss).reshape(1, 1, 1)


def contrastive_loss(output1, output2, y, margin=MARGIN, block_cols=None):
    B, D = output1.shape
    itemsize = jnp.dtype(output1.dtype).itemsize
    target_block_bytes, vmem_limit = _chip_defaults()

    # Lane-dense layout: feature dim on sublanes, batch dim on lanes.
    x1t = jnp.transpose(output1)        # (D, B)
    x2t = jnp.transpose(output2)        # (D, B)
    y2d = y.reshape(1, B)               # (1, B) lane-dense labels

    # Pick a batch tile: ~target bytes per input block, multiple of 128 lanes
    # (or the full batch when it already fits, always a legal block shape).
    if block_cols is None:
        cap = max(128, ((target_block_bytes // max(D * itemsize, 1)) // 128) * 128)
        block_cols = B if B <= cap else cap
    assert block_cols == B or block_cols % 128 == 0, \
        "block_cols must be the full batch or a multiple of 128"

    nb = pl.cdiv(B, block_cols)          # number of batch tiles (python int)
    ragged = (B % block_cols) != 0

    kernel = functools.partial(
        _contrastive_loss_kernel,
        margin=float(margin), batch=B,
        block_cols=block_cols, ragged=ragged)

    partials = pl.pallas_call(
        kernel,
        out_shape=jax.ShapeDtypeStruct((nb, 1, 1), jnp.float32),
        grid=(nb,),
        in_specs=[
            pl.BlockSpec((D, block_cols), lambda i: (0, i)),
            pl.BlockSpec((D, block_cols), lambda i: (0, i)),
            pl.BlockSpec((1, block_cols), lambda i: (0, i)),
        ],
        out_specs=pl.BlockSpec((1, 1, 1), lambda i: (i, 0, 0)),
        compiler_params=pltpu.CompilerParams(
            dimension_semantics=("parallel",),   # megacore-shardable on v7x
            vmem_limit_bytes=vmem_limit,
        ),
        cost_estimate=pl.CostEstimate(
            flops=int(4 * B * D + 8 * B),
            transcendentals=int(B),
            bytes_accessed=int(2 * B * D * itemsize + B * 4 + nb * 4),
        ),
    )(x1t, x2t, y2d)

    return jnp.sum(partials) / B


def _reference_loss(output1, output2, y, margin=MARGIN):
    # Pure-JAX reference mirroring the PyTorch forward exactly.
    diff = output1.astype(jnp.float32) - output2.astype(jnp.float32) + PAIRWISE_EPS
    d = jnp.sqrt(jnp.sum(diff * diff, axis=-1))
    yf = y.astype(jnp.float32)
    return jnp.mean((1.0 - yf) * d * d
                    + yf * jnp.square(jnp.maximum(margin - d, 0.0)))


if __name__ == "__main__":
    key = jax.random.PRNGKey(0)

    # Case 1: small demo shape (single full tile, no masking path).
    k1, k2, k3 = jax.random.split(key, 3)
    B, D = 8, 32
    o1 = jax.random.normal(k1, (B, D), dtype=jnp.float32)
    o2 = jax.random.normal(k2, (B, D), dtype=jnp.float32)
    Y = jax.random.bernoulli(k3, p=0.5, shape=(B,)).astype(jnp.float32)

    loss = contrastive_loss(o1, o2, Y)
    jax.block_until_ready(loss)
    ref = _reference_loss(o1, o2, Y)
    assert jnp.allclose(loss, ref, rtol=1e-4, atol=1e-5), (loss, ref)

    # Case 2: ragged batch + forced tiling to exercise the masked lane path
    # (nb = 3 tiles of 128 columns, last tile only 44 valid columns).
    k4, k5, k6 = jax.random.split(jax.random.PRNGKey(1), 3)
    B2, D2 = 300, 160
    p1 = jax.random.normal(k4, (B2, D2), dtype=jnp.float32)
    p2 = jax.random.normal(k5, (B2, D2), dtype=jnp.float32)
    Y2 = jax.random.bernoulli(k6, p=0.5, shape=(B2,)).astype(jnp.float32)

    loss2 = contrastive_loss(p1, p2, Y2, block_cols=128)
    jax.block_until_ready(loss2)
    ref2 = _reference_loss(p1, p2, Y2)
    assert jnp.allclose(loss2, ref2, rtol=1e-4, atol=1e-5), (loss2, ref2)

    print("KERNEL_OK")
</pallas_src>

<mosaic_0001>
module attributes {stable_mosaic.version = 11 : i64} {
  func.func @_contrastive_loss_kernel(%arg0: i32, %arg1: memref<32x8xf32, #tpu.memory_space<vmem>>, %arg2: memref<32x8xf32, #tpu.memory_space<vmem>>, %arg3: memref<1x8xf32, #tpu.memory_space<vmem>>, %arg4: memref<1x1x1xf32, #tpu.memory_space<vmem>>) attributes {dimension_semantics = [#tpu.dimension_semantics<parallel>], iteration_bounds = array<i64: 1>, scalar_prefetch = 0 : i64, scratch_operands = 0 : i64, tpu.core_type = #tpu.core_type<tc>, window_params = [{transform_indices = @transform_0, window_bounds = array<i64: 32, 8>}, {transform_indices = @transform_1, window_bounds = array<i64: 32, 8>}, {transform_indices = @transform_2, window_bounds = array<i64: 1, 8>}, {transform_indices = @transform_3, window_bounds = array<i64: 1, 1, 1>}]} {
    %c0 = arith.constant 0 : index
    %c0_0 = arith.constant 0 : index
    %0 = vector.load %arg1[%c0, %c0_0] : memref<32x8xf32, #tpu.memory_space<vmem>>, vector<32x8xf32>
    %c0_1 = arith.constant 0 : index
    %c0_2 = arith.constant 0 : index
    %1 = vector.load %arg2[%c0_1, %c0_2] : memref<32x8xf32, #tpu.memory_space<vmem>>, vector<32x8xf32>
    %2 = arith.subf %0, %1 : vector<32x8xf32>
    %cst = arith.constant 9.99999997E-7 : f32
    %3 = vector.broadcast %cst : f32 to vector<32x8xf32>
    %4 = arith.addf %2, %3 : vector<32x8xf32>
    %5 = arith.mulf %4, %4 : vector<32x8xf32>
    %cst_3 = arith.constant dense<0.000000e+00> : vector<8xf32>
    %6 = vector.multi_reduction <add>, %5, %cst_3 [0] : vector<32x8xf32> to vector<8xf32>
    %7 = vector.shape_cast %6 : vector<8xf32> to vector<1x8xf32>
    %8 = math.sqrt %7 : vector<1x8xf32>
    %c0_4 = arith.constant 0 : index
    %c0_5 = arith.constant 0 : index
    %9 = vector.load %arg3[%c0_4, %c0_5] : memref<1x8xf32, #tpu.memory_space<vmem>>, vector<1x8xf32>
    %cst_6 = arith.constant 2.000000e+00 : f32
    %10 = vector.broadcast %cst_6 : f32 to vector<1x8xf32>
    %11 = arith.subf %10, %8 : vector<1x8xf32>
    %cst_7 = arith.constant 0.000000e+00 : f32
    %12 = vector.broadcast %cst_7 : f32 to vector<1x8xf32>
    %13 = arith.maximumf %11, %12 : vector<1x8xf32>
    %cst_8 = arith.constant 1.000000e+00 : f32
    %14 = vector.broadcast %cst_8 : f32 to vector<1x8xf32>
    %15 = arith.subf %14, %9 : vector<1x8xf32>
    %16 = arith.mulf %15, %7 : vector<1x8xf32>
    %17 = arith.mulf %13, %13 : vector<1x8xf32>
    %18 = arith.mulf %9, %17 : vector<1x8xf32>
    %19 = arith.addf %16, %18 : vector<1x8xf32>
    %20 = vector.shape_cast %19 : vector<1x8xf32> to vector<1x1x8xf32>
    %cst_9 = arith.constant dense<0.000000e+00> : vector<1xf32>
    %21 = vector.multi_reduction <add>, %20, %cst_9 [1, 2] : vector<1x1x8xf32> to vector<1xf32>
    %22 = vector.shape_cast %21 : vector<1xf32> to vector<1x1x1xf32>
    %23 = vector.extract %22[0, 0, 0] : f32 from vector<1x1x1xf32>
    %24 = vector.broadcast %23 : f32 to vector<1x1x1xf32>
    %c0_10 = arith.constant 0 : index
    %c0_11 = arith.constant 0 : index
    %c0_12 = arith.constant 0 : index
    %25 = vector.load %arg4[%c0_10, %c0_11, %c0_12] : memref<1x1x1xf32, #tpu.memory_space<vmem>>, vector<1x1x1xf32>
    tpu.vector_store %arg4[%c0_10, %c0_11, %c0_12], %24 {strides = array<i32>} : memref<1x1x1xf32, #tpu.memory_space<vmem>>, vector<1x1x1xf32>,
    return
  }
  func.func @transform_0(%arg0: i32) -> (i32, i32) {
    %c0_i32 = arith.constant 0 : i32
    %c0_i32_0 = arith.constant 0 : i32
    return %c0_i32, %arg0 : i32, i32
  }
  func.func @transform_1(%arg0: i32) -> (i32, i32) {
    %c0_i32 = arith.constant 0 : i32
    %c0_i32_0 = arith.constant 0 : i32
    return %c0_i32, %arg0 : i32, i32
  }
  func.func @transform_2(%arg0: i32) -> (i32, i32) {
    %c0_i32 = arith.constant 0 : i32
    %c0_i32_0 = arith.constant 0 : i32
    return %c0_i32, %arg0 : i32, i32
  }
  func.func @transform_3(%arg0: i32) -> (i32, i32, i32) {
    %c0_i32 = arith.constant 0 : i32
    %c0_i32_0 = arith.constant 0 : i32
    %c0_i32_1 = arith.constant 0 : i32
    return %arg0, %c0_i32, %c0_i32_0 : i32, i32, i32
  }
}

</mosaic_0001>

<llo_original>
// kernel: tpu_custom_call.1
$region0: #{tpu_custom_call.1}
  #allocation0 [shape = 'u32[]', space=smem, size = 0x4, offset = 0x4, fixed_abs, tag = 'smem constant byte address 0x4 - core index']
  #allocation1 [shape = 'u32[144,128]{1,0:T(1,128)}', space=vmem, size = 0x12000, scoped, tag = 'internal scratch']
  %s0 = inlined_call_operand.vmem [shape: f32[32,8], index: 0, kind: input, shape index: {}]
  %s1 = inlined_call_operand.vmem [shape: f32[32,8], index: 1, kind: input, shape index: {}]
  %s2 = inlined_call_operand.vmem [shape: f32[1,8], index: 2, kind: input, shape index: {}]
  %s3 = inlined_call_operand.hbm [shape: f32[1,1,1], index: 3, kind: output, shape index: {}]
  %s4 = sld [smem:[#allocation0]]
  $region22: #{tpu_custom_call.1} parent=0
    _
  %s6 = ssub.s32 1, %s4
  %s7 = scalar_select 0, %s6, %s4
  $region1: #{tpu_custom_call.1} parent=0
    #allocation2 [shape = 'u8[512]{0}', space=vmem, size = 0x400, scoped, tag = 'output window, operand 0, single buffered']
    #allocation3 [shape = 's32[1]{0}', space=sflag, size = 0x4, scoped, tag = 'scoped memory for tpu_custom_call.1']
    %8 = vsyncpa [#allocation3], 0
    // Predicated region
    $region2: #{tpu_custom_call.1} parent=1 // pred_check
      _
    $region3: #{tpu_custom_call.1} parent=1 // pred_check_branch
      %10 = sbr.rel (0) target = $region5
    $region4: #{tpu_custom_call.1} parent=1 // pred_region
      _
    $region5: #{tpu_custom_call.1} parent=1 // pred_fallthru
      _
    // Predicated region
    $region6: #{tpu_custom_call.1} parent=1 // pred_check
      _
    $region7: #{tpu_custom_call.1} parent=1 // pred_check_branch
      %12 = sbr.rel (0) target = $region9
    $region8: #{tpu_custom_call.1} parent=1 // pred_region
      _
    $region9: #{tpu_custom_call.1} parent=1 // pred_fallthru
      _
    // Predicated region
    $region10: #{tpu_custom_call.1} parent=1 // pred_check
      _
    $region11: #{tpu_custom_call.1} parent=1 // pred_check_branch
      %14 = sbr.rel (0) target = $region13
    $region12: #{tpu_custom_call.1} parent=1 // pred_region
      _
    $region13: #{tpu_custom_call.1} parent=1 // pred_fallthru
      _
    %v15 = vld [vmem:[%s0] sm:$0xff]
    %v16 = vld [vmem:[%s0 + $0x8] sm:$0xff]
    %v17 = vld [vmem:[%s0 + $0x10] sm:$0xff]
    %v18 = vld [vmem:[%s0 + $0x18] sm:$0xff]
    %v19 = vld [vmem:[%s1] sm:$0xff]
    %v20 = vld [vmem:[%s1 + $0x8] sm:$0xff]
    %v21 = vld [vmem:[%s1 + $0x10] sm:$0xff]
    %v22 = vld [vmem:[%s1 + $0x18] sm:$0xff]
    %v23 = vsub.f32 %v15, %v19
    %v24 = vsub.f32 %v16, %v20
    %v25 = vsub.f32 %v17, %v21
    %v26 = vsub.f32 %v18, %v22
    %v27 = vadd.f32 %v23, 1e-06
    %v28 = vadd.f32 %v24, 1e-06
    %v29 = vadd.f32 %v25, 1e-06
    %v30 = vadd.f32 %v26, 1e-06
    %v31 = vmul.f32 %v27, %v27
    %v32 = vmul.f32 %v28, %v28
    %v33 = vmul.f32 %v29, %v29
    %v34 = vmul.f32 %v30, %v30
    %vm35 = vcmask 64512
    %v36 = vsel %vm35, %v31, 0.0
    %v37 = vsel %vm35, %v32, 0.0
    %v38 = vadd.f32 %v36, %v37
    %v39 = vsel %vm35, %v33, 0.0
    %v40 = vadd.f32 %v38, %v39
    %v41 = vsel %vm35, %v34, 0.0
    %v42 = vadd.f32 %v40, %v41
    %v43 = vrot.slane %v42, 4
    %v44 = vadd.f32 %v42, %v43
    %v45 = vrot.slane %v44, 2
    %v46 = vadd.f32 %v44, %v45
    %v47 = vrot.slane %v46, 1
    %v48 = vadd.f32 %v46, %v47
    %v49 = vrsqrt.pop %v48
    %v50 = vmul.f32 %v48, %v49
    %vm51 = vcmp.eq.f32.partialorder %v48, inf
    %v52 = vsel %vm51, %v48, %v50
    %vm53 = vcmp.eq.f32.partialorder %v48, 0.0
    %v54 = vand.u32 %v48, 2147483648
    %v55 = vsel %vm53, %v54, %v52
    %v56 = vld [vmem:[%s2] sm:$0x1]
    %v57 = vsub.f32 2.0, %v55
    %v58 = vmax.f32 %v57, 0.0
    %v59 = vsub.f32 1.0, %v56
    %v60 = vmul.f32 %v59, %v48
    %v61 = vmul.f32 %v58, %v58
    %v62 = vmul.f32 %v56, %v61
    %v63 = vadd.f32 %v60, %v62
    %vm64 = vcmask 57344
    %v65 = vsel %vm64, %v63, 0.0
    %66 = vadd.xlane.f32.xlu0 %v65
    %v67 = vpop.xlane.xlu0 %66
    %v68 = vrot.slane %v67, 4
    %v69 = vadd.f32 %v67, %v68
    %v70 = vrot.slane %v69, 2
    %v71 = vadd.f32 %v69, %v70
    %v72 = vrot.slane %v71, 1
    %v73 = vadd.f32 %v71, %v72
    %s74 = vtos %v73
    %v75 = vstv %s74
    %vm76 = vcmask 0
    %77 = vst.msk [vmem:[#allocation2] sm:$0x1] %vm76, %v75
    // Predicated region
    $region14: #{tpu_custom_call.1} parent=1 // pred_check
      _
    $region15: #{tpu_custom_call.1} parent=1 // pred_check_branch
      %79 = sbr.rel (0) target = $region17
    $region16: #{tpu_custom_call.1} parent=1 // pred_region
      %s81 = ssub.s32 16, 16
      %82 = vsyncadd [#allocation3], %s81
      %s84 = sshll.u32 [#allocation2], 4
      %s85 = int_to_ptr.vmem [resolvable:$true] %s84
      %87 = dma.vmem_to_hbm [thread:$0]  %s85, 16, %s3, [#allocation3]
    $region17: #{tpu_custom_call.1} parent=1 // pred_fallthru
      _
    // Predicated region
    $region18: #{tpu_custom_call.1} parent=1 // pred_check
      _
    $region19: #{tpu_custom_call.1} parent=1 // pred_check_branch
      %89 = sbr.rel (0) target = $region21
    $region20: #{tpu_custom_call.1} parent=1 // pred_region
      %90 = dma.done [#allocation3], 16
    $region21: #{tpu_custom_call.1} parent=1 // pred_fallthru
      _
    %91 = vsyncpa [#allocation3], 1

</llo_original>
